<compile_context>
chip_gen: v5e
topology: v5e:2x2
jax: 0.10.0
libtpu: 0.0.40
codegen_flags: <defaults>
</compile_context>

<pallas_src>
import functools
import math

import jax
import jax.numpy as jnp
from jax.experimental import pallas as pl
from jax.experimental.pallas import tpu as pltpu

# --- SpikePropUnit default constants ---
TAU_M, TAU_S, DT, THRESHOLD = 10.0, 6.0, 0.1, 1.0
# first element of the SRM PSP kernel tv(t) = (exp(-t/tau_m) - exp(-t/tau_s)) / (tau_m - tau_s)
TV1 = (math.exp(-DT / TAU_M) - math.exp(-DT / TAU_S)) / (TAU_M - TAU_S)
# TV1 > 0, so  z * TV1 > THRESHOLD  <=>  z > THRESHOLD / TV1   (fold the mul into the compare)
Z_THRESHOLD = THRESHOLD / TV1

IN_DIM, HID_DIM, OUT_DIM = 784, 100, 10
HID_PAD, OUT_PAD = 128, 128          # lane-dense MXU N dims / unmasked output stores
DEFAULT_TB = 1024                    # batch tile; ~11 MiB VMEM at tb=1024 (f32 in, bf16 weights/out)
VMEM_LIMIT_BYTES = 48 * 1024 * 1024  # headroom for tb sweeps; well under v7x 64 MiB/TC physical


def _round_up(x, m):
    return ((x + m - 1) // m) * m


def _pick_tb(batch, tb):
    """Big tile to amortize ~0.35 us/grid-step, but >=2 tiles when the batch allows it so
    v7x can shard the 'parallel' batch axis across both TensorCores."""
    tb = min(tb, _round_up(batch, 8))
    if pl.cdiv(batch, tb) < 2 and batch >= 16:
        tb = _round_up(pl.cdiv(batch, 2), 8)
    return tb


def _testnet_kernel(spk_ref, w1t_ref, w2t_ref, out_ref):
    # Spikes are exactly 0/1 -> bf16 cast is lossless. bf16 x bf16 dots run as native MXU
    # passes (no f32 emulation); accumulation stays f32 via preferred_element_type.
    x = spk_ref[...].astype(jnp.bfloat16)                                  # (tb, 784)
    # layer1 linear + SpikeProp neuron (step 0: history term is exactly zero)
    z1 = jnp.dot(x, w1t_ref[...], preferred_element_type=jnp.float32)      # (tb, 128) f32
    s1 = (z1 > Z_THRESHOLD).astype(jnp.bfloat16)
    # layer2 linear + SpikeProp neuron (padded hidden cols are zero -> never spike)
    z2 = jnp.dot(s1, w2t_ref[...], preferred_element_type=jnp.float32)     # (tb, 128) f32
    out_ref[...] = (z2 > Z_THRESHOLD).astype(out_ref.dtype)                # bf16 0/1 (lossless)


def prepare_testnet_weights(w1, w2):
    """One-time weight prep (hoisted out of the per-call path).

    w1: (100, 784), w2: (10, 100) -> w1t: (784, 128) bf16, w2t: (128, 128) bf16
    (transposed so the hot path is a plain x @ Wt matmul; zero-padded to 128 lanes —
    padded columns/rows never spike since 0 < Z_THRESHOLD).
    bf16 weights round z by ~2^-8 relative; spike decisions only change if z lies within
    that of the threshold. Keep an f32-weight path if strict parity is ever required.
    """
    w1t = jnp.zeros((IN_DIM, HID_PAD), jnp.float32).at[:, :HID_DIM].set(
        jnp.asarray(w1, jnp.float32).T)
    w2t = jnp.zeros((HID_PAD, OUT_PAD), jnp.float32).at[:HID_DIM, :OUT_DIM].set(
        jnp.asarray(w2, jnp.float32).T)
    return w1t.astype(jnp.bfloat16), w2t.astype(jnp.bfloat16)


@functools.partial(jax.jit, static_argnames=("tb",))
def testnet_forward(spk, w1t, w2t, *, tb=DEFAULT_TB):
    """spk: (B, 784); w1t: (784, 128) bf16; w2t: (128, 128) bf16  ->  (B, 10, 1) f32."""
    B = spk.shape[0]
    tb = _pick_tb(B, tb)
    grid = pl.cdiv(B, tb)   # no jnp.pad pass: Pallas masks the ragged edge block;
                            # garbage edge rows only produce output rows that are never read.

    cost = pl.CostEstimate(
        flops=2 * B * (IN_DIM * HID_PAD + HID_PAD * OUT_PAD),
        transcendentals=0,
        bytes_accessed=B * (IN_DIM * spk.dtype.itemsize + OUT_PAD * 2)
        + (IN_DIM * HID_PAD + HID_PAD * OUT_PAD) * 2,
    )

    out = pl.pallas_call(
        _testnet_kernel,
        out_shape=jax.ShapeDtypeStruct((B, OUT_PAD), jnp.bfloat16),  # bf16 spikes: half the writeback
        grid_spec=pltpu.PrefetchScalarGridSpec(
            num_scalar_prefetch=0,
            grid=(grid,),
            in_specs=[
                pl.BlockSpec((tb, IN_DIM), lambda i: (i, 0)),        # streamed batch tile (cast in VMEM)
                pl.BlockSpec((IN_DIM, HID_PAD), lambda i: (0, 0)),   # resident W1^T (bf16)
                pl.BlockSpec((HID_PAD, OUT_PAD), lambda i: (0, 0)),  # resident W2^T (bf16)
            ],
            out_specs=pl.BlockSpec((tb, OUT_PAD), lambda i: (i, 0)),
        ),
        compiler_params=pltpu.CompilerParams(
            dimension_semantics=("parallel",),       # megacore sharding of batch tiles (v7x)
            vmem_limit_bytes=VMEM_LIMIT_BYTES,
        ),
        cost_estimate=cost,
    )(spk, w1t, w2t)

    # NeuronFunc appends a trailing singleton time axis; drop lane padding, widen to f32
    # only on the already-sliced (B, 10) result.
    return out[:, :OUT_DIM].astype(jnp.float32).reshape(B, OUT_DIM, 1)


def _xavier_uniform(key, out_n, in_n):
    a = math.sqrt(6.0 / (in_n + out_n))
    return jax.random.uniform(key, (out_n, in_n), jnp.float32, minval=-a, maxval=a)


if __name__ == "__main__":
    key = jax.random.PRNGKey(0)
    k_spk, k_w1, k_w2 = jax.random.split(key, 3)

    B = 8
    # binary input spikes, as expected by a spiking network front-end
    spk = jax.random.bernoulli(k_spk, p=0.3, shape=(B, IN_DIM)).astype(jnp.float32)
    w1 = _xavier_uniform(k_w1, HID_DIM, IN_DIM)   # SpkLinear(784, 100).weight
    w2 = _xavier_uniform(k_w2, OUT_DIM, HID_DIM)  # SpkLinear(100, 10).weight

    w1t, w2t = prepare_testnet_weights(w1, w2)    # hoisted: compute once, reuse per call
    out = jax.block_until_ready(testnet_forward(spk, w1t, w2t))

    # pure-JAX reference of the same SpikeProp step, PyTorch-faithful math
    # (z * TV1 > threshold in f32) on the same bf16-rounded weights.
    w1q = w1t[:, :HID_DIM].astype(jnp.float32)        # (784, 100)
    w2q = w2t[:HID_DIM, :OUT_DIM].astype(jnp.float32)  # (100, 10)
    z1 = spk @ w1q
    s1 = (z1 * TV1 > THRESHOLD).astype(jnp.float32)
    z2 = s1 @ w2q
    ref = (z2 * TV1 > THRESHOLD).astype(jnp.float32).reshape(B, OUT_DIM, 1)

    assert out.shape == (B, OUT_DIM, 1) and out.dtype == jnp.float32
    assert bool(jnp.all(out == ref))
    print("KERNEL_OK")
</pallas_src>

<mosaic_0001>
module attributes {stable_mosaic.version = 11 : i64} {
  func.func @_testnet_kernel(%arg0: i32, %arg1: memref<8x784xf32, #tpu.memory_space<vmem>>, %arg2: memref<784x128xbf16, #tpu.memory_space<vmem>>, %arg3: memref<128x128xbf16, #tpu.memory_space<vmem>>, %arg4: memref<8x128xbf16, #tpu.memory_space<vmem>>) attributes {dimension_semantics = [#tpu.dimension_semantics<parallel>], iteration_bounds = array<i64: 1>, scalar_prefetch = 0 : i64, scratch_operands = 0 : i64, tpu.core_type = #tpu.core_type<tc>, window_params = [{transform_indices = @transform_0, window_bounds = array<i64: 8, 784>}, {pipeline_mode = #tpu.pipeline_mode<synchronous>, transform_indices = @transform_1, window_bounds = array<i64: 784, 128>}, {pipeline_mode = #tpu.pipeline_mode<synchronous>, transform_indices = @transform_2, window_bounds = array<i64: 128, 128>}, {transform_indices = @transform_3, window_bounds = array<i64: 8, 128>}]} {
    %c0 = arith.constant 0 : index
    %c0_0 = arith.constant 0 : index
    %0 = vector.load %arg1[%c0, %c0_0] : memref<8x784xf32, #tpu.memory_space<vmem>>, vector<8x784xf32>
    %1 = arith.truncf %0 : vector<8x784xf32> to vector<8x784xbf16>
    %c0_1 = arith.constant 0 : index
    %c0_2 = arith.constant 0 : index
    %2 = vector.load %arg2[%c0_1, %c0_2] : memref<784x128xbf16, #tpu.memory_space<vmem>>, vector<784x128xbf16>
    %cst = arith.constant dense<0.000000e+00> : vector<8x128xf32>
    %3 = tpu.matmul %1, %2, %cst {dimension_numbers = #tpu.dot_dimension_numbers<[1], [0], [0], [1], [0, 0, 1, 1], [], []>} : vector<8x784xbf16>, vector<784x128xbf16>, vector<8x128xf32> -> vector<8x128xf32>
    %cst_3 = arith.constant 608.052429 : f32
    %4 = vector.broadcast %cst_3 : f32 to vector<8x128xf32>
    %5 = arith.cmpf ogt, %3, %4 : vector<8x128xf32>
    %6 = arith.extui %5 : vector<8x128xi1> to vector<8x128xi32>
    %7 = arith.sitofp %6 : vector<8x128xi32> to vector<8x128xf32>
    %8 = arith.truncf %7 : vector<8x128xf32> to vector<8x128xbf16>
    %c0_4 = arith.constant 0 : index
    %c0_5 = arith.constant 0 : index
    %9 = vector.load %arg3[%c0_4, %c0_5] : memref<128x128xbf16, #tpu.memory_space<vmem>>, vector<128x128xbf16>
    %cst_6 = arith.constant dense<0.000000e+00> : vector<8x128xf32>
    %10 = tpu.matmul %8, %9, %cst_6 {dimension_numbers = #tpu.dot_dimension_numbers<[1], [0], [0], [1], [0, 0, 1, 1], [], []>} : vector<8x128xbf16>, vector<128x128xbf16>, vector<8x128xf32> -> vector<8x128xf32>
    %cst_7 = arith.constant 608.052429 : f32
    %11 = vector.broadcast %cst_7 : f32 to vector<8x128xf32>
    %12 = arith.cmpf ogt, %10, %11 : vector<8x128xf32>
    %13 = arith.extui %12 : vector<8x128xi1> to vector<8x128xi32>
    %14 = arith.sitofp %13 : vector<8x128xi32> to vector<8x128xf32>
    %15 = arith.truncf %14 : vector<8x128xf32> to vector<8x128xbf16>
    %c0_8 = arith.constant 0 : index
    %c0_9 = arith.constant 0 : index
    %16 = vector.load %arg4[%c0_8, %c0_9] : memref<8x128xbf16, #tpu.memory_space<vmem>>, vector<8x128xbf16>
    tpu.vector_store %arg4[%c0_8, %c0_9], %15 {strides = array<i32>} : memref<8x128xbf16, #tpu.memory_space<vmem>>, vector<8x128xbf16>,
    return
  }
  func.func @transform_0(%arg0: i32) -> (i32, i32) {
    %c0_i32 = arith.constant 0 : i32
    %c0_i32_0 = arith.constant 0 : i32
    return %arg0, %c0_i32 : i32, i32
  }
  func.func @transform_1(%arg0: i32) -> (i32, i32) {
    %c0_i32 = arith.constant 0 : i32
    %c0_i32_0 = arith.constant 0 : i32
    %c0_i32_1 = arith.constant 0 : i32
    return %c0_i32, %c0_i32_0 : i32, i32
  }
  func.func @transform_2(%arg0: i32) -> (i32, i32) {
    %c0_i32 = arith.constant 0 : i32
    %c0_i32_0 = arith.constant 0 : i32
    %c0_i32_1 = arith.constant 0 : i32
    return %c0_i32, %c0_i32_0 : i32, i32
  }
  func.func @transform_3(%arg0: i32) -> (i32, i32) {
    %c0_i32 = arith.constant 0 : i32
    %c0_i32_0 = arith.constant 0 : i32
    return %arg0, %c0_i32 : i32, i32
  }
}

</mosaic_0001>

<llo_original>
// kernel: testnet_forward.1
$region0: #{testnet_forward.1}
  #allocation0 [shape = 'u32[]', space=smem, size = 0x4, offset = 0x4, fixed_abs, tag = 'smem constant byte address 0x4 - core index']
  #allocation1 [shape = 'u32[72,128]{1,0:T(1,128)}', space=vmem, size = 0x9000, scoped, tag = 'internal scratch']
  %s0 = inlined_call_operand.hbm [shape: f32[8,784], index: 0, kind: input, shape index: {}]
  %s1 = inlined_call_operand.hbm [shape: bf16[784,128], index: 1, kind: input, shape index: {}]
  %s2 = inlined_call_operand.hbm [shape: bf16[128,128], index: 2, kind: input, shape index: {}]
  %s3 = inlined_call_operand.vmem [shape: bf16[8,128], index: 3, kind: output, shape index: {}]
  %s4 = sld [smem:[#allocation0]]
  $region34: #{testnet_forward.1} parent=0
    _
  %s6 = ssub.s32 1, %s4
  %s7 = scalar_select 0, %s6, %s4
  $region1: #{testnet_forward.1} parent=0
    #allocation2 [shape = 'u8[28672]{0}', space=vmem, size = 0x7000, scoped, tag = 'input window, operand 0, single buffered']
    #allocation3 [shape = 's32[1]{0}', space=sflag, size = 0x4, scoped, tag = 'scoped memory for testnet_forward.1']
    #allocation4 [shape = 'u8[200704]{0}', space=vmem, size = 0x31000, scoped, tag = 'input window, operand 1, single buffered']
    #allocation5 [shape = 's32[1]{0}', space=sflag, size = 0x4, scoped, tag = 'scoped memory for testnet_forward.1']
    #allocation6 [shape = 'u8[32768]{0}', space=vmem, size = 0x8000, scoped, tag = 'input window, operand 2, single buffered']
    %8 = vsyncpa [#allocation3], 0
    %9 = vsyncpa [#allocation5], 0
    // Predicated region
    $region2: #{testnet_forward.1} parent=1 // pred_check
      _
    $region3: #{testnet_forward.1} parent=1 // pred_check_branch
      %11 = sbr.rel (0) target = $region5
    $region4: #{testnet_forward.1} parent=1 // pred_region
      %13 = vsyncadd [#allocation3], 0
      %s15 = sshll.u32 %s0, 4
      %s16 = int_to_ptr.hbm [resolvable:$true] %s15
      %s17 = sshll.u32 [#allocation2], 4
      %s18 = int_to_ptr.vmem [resolvable:$true] %s17
      %20 = dma.hbm_to_vmem [thread:$0]  %s16, 896, %s18, [#allocation3]
    $region5: #{testnet_forward.1} parent=1 // pred_fallthru
      _
    // Predicated region
    $region6: #{testnet_forward.1} parent=1 // pred_check
      _
    $region7: #{testnet_forward.1} parent=1 // pred_check_branch
      %22 = sbr.rel (0) target = $region9
    $region8: #{testnet_forward.1} parent=1 // pred_region
      %24 = vsyncadd [#allocation5], 0
      %s25 = sshll.u32 %s1, 4
      %s26 = int_to_ptr.hbm [resolvable:$true] %s25
      %s27 = sshll.u32 [#allocation4], 4
      %s28 = int_to_ptr.vmem [resolvable:$true] %s27
      %33 = dma.hbm_to_vmem [thread:$0]  %s26, 6272, %s28, [#allocation5], 64, 64, 4
    $region9: #{testnet_forward.1} parent=1 // pred_fallthru
      _
    // Predicated region
    $region10: #{testnet_forward.1} parent=1 // pred_check
      _
    $region11: #{testnet_forward.1} parent=1 // pred_check_branch
      %35 = sbr.rel (0) target = $region13
    $region12: #{testnet_forward.1} parent=1 // pred_region
      %37 = vsyncadd [#allocation5], 0
      %s38 = sshll.u32 %s2, 4
      %s39 = int_to_ptr.hbm [resolvable:$true] %s38
      %s40 = sshll.u32 [#allocation6], 4
      %s41 = int_to_ptr.vmem [resolvable:$true] %s40
      %46 = dma.hbm_to_vmem [thread:$0]  %s39, 1024, %s41, [#allocation5], 64, 64, 4
    $region13: #{testnet_forward.1} parent=1 // pred_fallthru
      _
    // Predicated region
    $region14: #{testnet_forward.1} parent=1 // pred_check
      _
    $region15: #{testnet_forward.1} parent=1 // pred_check_branch
      %48 = sbr.rel (0) target = $region17
    $region16: #{testnet_forward.1} parent=1 // pred_region
      %50 = dma.done [#allocation3], 896
    $region17: #{testnet_forward.1} parent=1 // pred_fallthru
      _
    // Predicated region
    $region18: #{testnet_forward.1} parent=1 // pred_check
      _
    $region19: #{testnet_forward.1} parent=1 // pred_check_branch
      %52 = sbr.rel (0) target = $region21
    $region20: #{testnet_forward.1} parent=1 // pred_region
      %54 = dma.done [#allocation5], 6272
    $region21: #{testnet_forward.1} parent=1 // pred_fallthru
      _
    // Predicated region
    $region22: #{testnet_forward.1} parent=1 // pred_check
      _
    $region23: #{testnet_forward.1} parent=1 // pred_check_branch
      %56 = sbr.rel (0) target = $region25
    $region24: #{testnet_forward.1} parent=1 // pred_region
      %58 = dma.done [#allocation5], 1024
    $region25: #{testnet_forward.1} parent=1 // pred_fallthru
      _
    %v60 = vld [vmem:[#allocation2] sm:$0xff]
    %v61 = vld [vmem:[#allocation2 + $0x8] sm:$0xff]
    %v62 = vld [vmem:[#allocation2 + $0x10] sm:$0xff]
    %v63 = vld [vmem:[#allocation2 + $0x18] sm:$0xff]
    %v64 = vld [vmem:[#allocation2 + $0x20] sm:$0xff]
    %v65 = vld [vmem:[#allocation2 + $0x28] sm:$0xff]
    %v66 = vld [vmem:[#allocation2 + $0x30] sm:$0xff]
    %v67 = vpack.c.bf16 %v60, %v60
    %v68 = vpack.c.bf16 %v61, %v61
    %v69 = vpack.c.bf16 %v62, %v62
    %v70 = vpack.c.bf16 %v63, %v63
    %v71 = vpack.c.bf16 %v64, %v64
    %v72 = vpack.c.bf16 %v65, %v65
    %v73 = vpack.c.bf16 %v66, %v66
    %v74 = vld [vmem:[#allocation4] sm:$0xf]
    %v75 = vld [vmem:[#allocation4 + $0x4] sm:$0xf]
    %v76 = vld [vmem:[#allocation4 + $0x8] sm:$0xf]
    %v77 = vld [vmem:[#allocation4 + $0xc] sm:$0xf]
    %v78 = vld [vmem:[#allocation4 + $0x10] sm:$0xf]
    %v79 = vld [vmem:[#allocation4 + $0x14] sm:$0xf]
    %v80 = vld [vmem:[#allocation4 + $0x18] sm:$0xf]
    %v81 = vld [vmem:[#allocation4 + $0x1c] sm:$0xf]
    %v82 = vld [vmem:[#allocation4 + $0x20] sm:$0xf]
    %v83 = vld [vmem:[#allocation4 + $0x24] sm:$0xf]
    %v84 = vld [vmem:[#allocation4 + $0x28] sm:$0xf]
    %v85 = vld [vmem:[#allocation4 + $0x2c] sm:$0xf]
    %v86 = vld [vmem:[#allocation4 + $0x30] sm:$0xf]
    %v87 = vld [vmem:[#allocation4 + $0x34] sm:$0xf]
    %v88 = vld [vmem:[#allocation4 + $0x38] sm:$0xf]
    %v89 = vld [vmem:[#allocation4 + $0x3c] sm:$0xf]
    %v90 = vld [vmem:[#allocation4 + $0x40] sm:$0xf]
    %v91 = vld [vmem:[#allocation4 + $0x44] sm:$0xf]
    %v92 = vld [vmem:[#allocation4 + $0x48] sm:$0xf]
    %v93 = vld [vmem:[#allocation4 + $0x4c] sm:$0xf]
    %v94 = vld [vmem:[#allocation4 + $0x50] sm:$0xf]
    %v95 = vld [vmem:[#allocation4 + $0x54] sm:$0xf]
    %v96 = vld [vmem:[#allocation4 + $0x58] sm:$0xf]
    %v97 = vld [vmem:[#allocation4 + $0x5c] sm:$0xf]
    %v98 = vld [vmem:[#allocation4 + $0x60] sm:$0xf]
    %v99 = vld [vmem:[#allocation4 + $0x64] sm:$0xf]
    %v100 = vld [vmem:[#allocation4 + $0x68] sm:$0xf]
    %v101 = vld [vmem:[#allocation4 + $0x6c] sm:$0xf]
    %v102 = vld [vmem:[#allocation4 + $0x70] sm:$0xf]
    %v103 = vld [vmem:[#allocation4 + $0x74] sm:$0xf]
    %v104 = vld [vmem:[#allocation4 + $0x78] sm:$0xf]
    %v105 = vld [vmem:[#allocation4 + $0x7c] sm:$0xf]
    %v106 = vld [vmem:[#allocation4 + $0x80] sm:$0xf]
    %v107 = vld [vmem:[#allocation4 + $0x84] sm:$0xf]
    %v108 = vld [vmem:[#allocation4 + $0x88] sm:$0xf]
    %v109 = vld [vmem:[#allocation4 + $0x8c] sm:$0xf]
    %v110 = vld [vmem:[#allocation4 + $0x90] sm:$0xf]
    %v111 = vld [vmem:[#allocation4 + $0x94] sm:$0xf]
    %v112 = vld [vmem:[#allocation4 + $0x98] sm:$0xf]
    %v113 = vld [vmem:[#allocation4 + $0x9c] sm:$0xf]
    %v114 = vld [vmem:[#allocation4 + $0xa0] sm:$0xf]
    %v115 = vld [vmem:[#allocation4 + $0xa4] sm:$0xf]
    %v116 = vld [vmem:[#allocation4 + $0xa8] sm:$0xf]
    %v117 = vld [vmem:[#allocation4 + $0xac] sm:$0xf]
    %v118 = vld [vmem:[#allocation4 + $0xb0] sm:$0xf]
    %v119 = vld [vmem:[#allocation4 + $0xb4] sm:$0xf]
    %v120 = vld [vmem:[#allocation4 + $0xb8] sm:$0xf]
    %v121 = vld [vmem:[#allocation4 + $0xbc] sm:$0xf]
    %v122 = vld [vmem:[#allocation4 + $0xc0] sm:$0xf]
    %v123 = vld [vmem:[#allocation4 + $0xc4] sm:$0xf]
    %v124 = vld [vmem:[#allocation4 + $0xc8] sm:$0xf]
    %v125 = vld [vmem:[#allocation4 + $0xcc] sm:$0xf]
    %v126 = vld [vmem:[#allocation4 + $0xd0] sm:$0xf]
    %v127 = vld [vmem:[#allocation4 + $0xd4] sm:$0xf]
    %v128 = vld [vmem:[#allocation4 + $0xd8] sm:$0xf]
    %v129 = vld [vmem:[#allocation4 + $0xdc] sm:$0xf]
    %v130 = vld [vmem:[#allocation4 + $0xe0] sm:$0xf]
    %v131 = vld [vmem:[#allocation4 + $0xe4] sm:$0xf]
    %v132 = vld [vmem:[#allocation4 + $0xe8] sm:$0xf]
    %v133 = vld [vmem:[#allocation4 + $0xec] sm:$0xf]
    %v134 = vld [vmem:[#allocation4 + $0xf0] sm:$0xf]
    %v135 = vld [vmem:[#allocation4 + $0xf4] sm:$0xf]
    %v136 = vld [vmem:[#allocation4 + $0xf8] sm:$0xf]
    %v137 = vld [vmem:[#allocation4 + $0xfc] sm:$0xf]
    %v138 = vld [vmem:[#allocation4 + $0x100] sm:$0xf]
    %v139 = vld [vmem:[#allocation4 + $0x104] sm:$0xf]
    %v140 = vld [vmem:[#allocation4 + $0x108] sm:$0xf]
    %v141 = vld [vmem:[#allocation4 + $0x10c] sm:$0xf]
    %v142 = vld [vmem:[#allocation4 + $0x110] sm:$0xf]
    %v143 = vld [vmem:[#allocation4 + $0x114] sm:$0xf]
    %v144 = vld [vmem:[#allocation4 + $0x118] sm:$0xf]
    %v145 = vld [vmem:[#allocation4 + $0x11c] sm:$0xf]
    %v146 = vld [vmem:[#allocation4 + $0x120] sm:$0xf]
    %v147 = vld [vmem:[#allocation4 + $0x124] sm:$0xf]
    %v148 = vld [vmem:[#allocation4 + $0x128] sm:$0xf]
    %v149 = vld [vmem:[#allocation4 + $0x12c] sm:$0xf]
    %v150 = vld [vmem:[#allocation4 + $0x130] sm:$0xf]
    %v151 = vld [vmem:[#allocation4 + $0x134] sm:$0xf]
    %v152 = vld [vmem:[#allocation4 + $0x138] sm:$0xf]
    %v153 = vld [vmem:[#allocation4 + $0x13c] sm:$0xf]
    %v154 = vld [vmem:[#allocation4 + $0x140] sm:$0xf]
    %v155 = vld [vmem:[#allocation4 + $0x144] sm:$0xf]
    %v156 = vld [vmem:[#allocation4 + $0x148] sm:$0xf]
    %v157 = vld [vmem:[#allocation4 + $0x14c] sm:$0xf]
    %v158 = vld [vmem:[#allocation4 + $0x150] sm:$0xf]
    %v159 = vld [vmem:[#allocation4 + $0x154] sm:$0xf]
    %v160 = vld [vmem:[#allocation4 + $0x158] sm:$0xf]
    %v161 = vld [vmem:[#allocation4 + $0x15c] sm:$0xf]
    %v162 = vld [vmem:[#allocation4 + $0x160] sm:$0xf]
    %v163 = vld [vmem:[#allocation4 + $0x164] sm:$0xf]
    %v164 = vld [vmem:[#allocation4 + $0x168] sm:$0xf]
    %v165 = vld [vmem:[#allocation4 + $0x16c] sm:$0xf]
    %v166 = vld [vmem:[#allocation4 + $0x170] sm:$0xf]
    %v167 = vld [vmem:[#allocation4 + $0x174] sm:$0xf]
    %v168 = vld [vmem:[#allocation4 + $0x178] sm:$0xf]
    %v169 = vld [vmem:[#allocation4 + $0x17c] sm:$0xf]
    %v170 = vld [vmem:[#allocation4 + $0x180] sm:$0xf]
    %v171 = vld [vmem:[#allocation4 + $0x184] sm:$0xf]
    %v270 = vunpack.c.l.b16 %v74
    %v271 = vunpack.c.l.b16 %v75
    %v272 = vunpack.c.l.b16 %v76
    %v273 = vunpack.c.l.b16 %v77
    %v274 = vunpack.c.l.b16 %v78
    %v275 = vunpack.c.l.b16 %v79
    %v276 = vunpack.c.l.b16 %v80
    %v277 = vunpack.c.l.b16 %v81
    %v278 = vunpack.c.l.b16 %v82
    %v279 = vunpack.c.l.b16 %v83
    %v280 = vunpack.c.l.b16 %v84
    %v281 = vunpack.c.l.b16 %v85
    %v282 = vunpack.c.l.b16 %v86
    %v283 = vunpack.c.l.b16 %v87
    %v284 = vunpack.c.l.b16 %v88
    %v285 = vunpack.c.l.b16 %v89
    %v286 = vunpack.c.l.b16 %v90
    %v287 = vunpack.c.l.b16 %v91
    %v288 = vunpack.c.l.b16 %v92
    %v289 = vunpack.c.l.b16 %v93
    %v290 = vunpack.c.l.b16 %v94
    %v291 = vunpack.c.l.b16 %v95
    %v292 = vunpack.c.l.b16 %v96
    %v293 = vunpack.c.l.b16 %v97
    %v294 = vunpack.c.l.b16 %v98
    %v295 = vunpack.c.l.b16 %v99
    %v296 = vunpack.c.l.b16 %v100
    %v297 = vunpack.c.l.b16 %v101
    %v298 = vunpack.c.l.b16 %v102
    %v299 = vunpack.c.l.b16 %v103
    %v300 = vunpack.c.l.b16 %v104
    %v301 = vunpack.c.l.b16 %v105
    %v302 = vunpack.c.l.b16 %v106
    %v303 = vunpack.c.l.b16 %v107
    %v304 = vunpack.c.l.b16 %v108
    %v305 = vunpack.c.l.b16 %v109
    %v306 = vunpack.c.l.b16 %v110
    %v307 = vunpack.c.l.b16 %v111
    %v308 = vunpack.c.l.b16 %v112
    %v309 = vunpack.c.l.b16 %v113
    %v310 = vunpack.c.l.b16 %v114
    %v311 = vunpack.c.l.b16 %v115
    %v312 = vunpack.c.l.b16 %v116
    %v313 = vunpack.c.l.b16 %v117
    %v314 = vunpack.c.l.b16 %v118
    %v315 = vunpack.c.l.b16 %v119
    %v316 = vunpack.c.l.b16 %v120
    %v317 = vunpack.c.l.b16 %v121
    %v318 = vunpack.c.l.b16 %v122
    %v319 = vunpack.c.l.b16 %v123
    %v320 = vunpack.c.l.b16 %v124
    %v321 = vunpack.c.l.b16 %v125
    %v322 = vunpack.c.l.b16 %v126
    %v323 = vunpack.c.l.b16 %v127
    %v324 = vunpack.c.l.b16 %v128
    %v325 = vunpack.c.l.b16 %v129
    %v326 = vunpack.c.l.b16 %v130
    %v327 = vunpack.c.l.b16 %v131
    %v328 = vunpack.c.l.b16 %v132
    %v329 = vunpack.c.l.b16 %v133
    %v330 = vunpack.c.l.b16 %v134
    %v331 = vunpack.c.l.b16 %v135
    %v332 = vunpack.c.l.b16 %v136
    %v333 = vunpack.c.l.b16 %v137
    %v334 = vunpack.c.l.b16 %v138
    %v335 = vunpack.c.l.b16 %v139
    %v336 = vunpack.c.l.b16 %v140
    %v337 = vunpack.c.l.b16 %v141
    %v338 = vunpack.c.l.b16 %v142
    %v339 = vunpack.c.l.b16 %v143
    %v340 = vunpack.c.l.b16 %v144
    %v341 = vunpack.c.l.b16 %v145
    %v342 = vunpack.c.l.b16 %v146
    %v343 = vunpack.c.l.b16 %v147
    %v344 = vunpack.c.l.b16 %v148
    %v345 = vunpack.c.l.b16 %v149
    %v346 = vunpack.c.l.b16 %v150
    %v347 = vunpack.c.l.b16 %v151
    %v348 = vunpack.c.l.b16 %v152
    %v349 = vunpack.c.l.b16 %v153
    %v350 = vunpack.c.l.b16 %v154
    %v351 = vunpack.c.l.b16 %v155
    %v352 = vunpack.c.l.b16 %v156
    %v353 = vunpack.c.l.b16 %v157
    %v354 = vunpack.c.l.b16 %v158
    %v355 = vunpack.c.l.b16 %v159
    %v356 = vunpack.c.l.b16 %v160
    %v357 = vunpack.c.l.b16 %v161
    %v358 = vunpack.c.l.b16 %v162
    %v359 = vunpack.c.l.b16 %v163
    %v360 = vunpack.c.l.b16 %v164
    %v361 = vunpack.c.l.b16 %v165
    %v362 = vunpack.c.l.b16 %v166
    %v363 = vunpack.c.l.b16 %v167
    %v364 = vunpack.c.l.b16 %v168
    %v365 = vunpack.c.l.b16 %v169
    %v366 = vunpack.c.l.b16 %v170
    %v367 = vunpack.c.l.b16 %v171
    %v368 = vpack.c.b16 %v271, %v270
    %v369 = vpack.c.b16 %v273, %v272
    %v370 = vpack.c.b16 %v275, %v274
    %v371 = vpack.c.b16 %v277, %v276
    %v372 = vpack.c.b16 %v279, %v278
    %v373 = vpack.c.b16 %v281, %v280
    %v374 = vpack.c.b16 %v283, %v282
    %v375 = vpack.c.b16 %v285, %v284
    %v376 = vpack.c.b16 %v287, %v286
    %v377 = vpack.c.b16 %v289, %v288
    %v378 = vpack.c.b16 %v291, %v290
    %v379 = vpack.c.b16 %v293, %v292
    %v380 = vpack.c.b16 %v295, %v294
    %v381 = vpack.c.b16 %v297, %v296
    %v382 = vpack.c.b16 %v299, %v298
    %v383 = vpack.c.b16 %v301, %v300
    %v384 = vpack.c.b16 %v303, %v302
    %v385 = vpack.c.b16 %v305, %v304
    %v386 = vpack.c.b16 %v307, %v306
    %v387 = vpack.c.b16 %v309, %v308
    %v388 = vpack.c.b16 %v311, %v310
    %v389 = vpack.c.b16 %v313, %v312
    %v390 = vpack.c.b16 %v315, %v314
    %v391 = vpack.c.b16 %v317, %v316
    %v392 = vpack.c.b16 %v319, %v318
    %v393 = vpack.c.b16 %v321, %v320
    %v394 = vpack.c.b16 %v323, %v322
    %v395 = vpack.c.b16 %v325, %v324
    %v396 = vpack.c.b16 %v327, %v326
    %v397 = vpack.c.b16 %v329, %v328
    %v398 = vpack.c.b16 %v331, %v330
    %v399 = vpack.c.b16 %v333, %v332
    %v400 = vpack.c.b16 %v335, %v334
    %v401 = vpack.c.b16 %v337, %v336
    %v402 = vpack.c.b16 %v339, %v338
    %v403 = vpack.c.b16 %v341, %v340
    %v404 = vpack.c.b16 %v343, %v342
    %v405 = vpack.c.b16 %v345, %v344
    %v406 = vpack.c.b16 %v347, %v346
    %v407 = vpack.c.b16 %v349, %v348
    %v408 = vpack.c.b16 %v351, %v350
    %v409 = vpack.c.b16 %v353, %v352
    %v410 = vpack.c.b16 %v355, %v354
    %v411 = vpack.c.b16 %v357, %v356
    %v412 = vpack.c.b16 %v359, %v358
    %v413 = vpack.c.b16 %v361, %v360
    %v414 = vpack.c.b16 %v363, %v362
    %v415 = vpack.c.b16 %v365, %v364
    %v416 = vpack.c.b16 %v367, %v366
    %vm466 = vcmask 130048
    %v468 = vsel %vm466, %v73, 0
    %470 = vmatpush.bf16.msra.mxu0 %v375
    %471 = vmatpush.bf16.msra.mxu0 %v374
    %472 = vmatpush.bf16.msra.mxu0 %v373
    %473 = vmatpush.bf16.msra.mxu0 %v372
    %474 = vmatpush.bf16.msra.mxu0 %v371
    %475 = vmatpush.bf16.msra.mxu0 %v370
    %476 = vmatpush.bf16.msra.mxu0 %v369
    %477 = vmatpush.bf16.msra.mxu0 %v368
    %478 = vmatmul.bf16.gmra.mxu0 %v67
    %v479 = vpop.f32.mrf.mxu0
    %v480 = vadd.f32 0.0, %v479
    %v481 = vpop.f32.mrf.mxu0
    %482 = vdwg.mxu0
    %483 = vmatpush.bf16.msra.mxu0 %v383
    %484 = vmatpush.bf16.msra.mxu0 %v382
    %485 = vmatpush.bf16.msra.mxu0 %v381
    %486 = vmatpush.bf16.msra.mxu0 %v380
    %487 = vmatpush.bf16.msra.mxu0 %v379
    %488 = vmatpush.bf16.msra.mxu0 %v378
    %489 = vmatpush.bf16.msra.mxu0 %v377
    %490 = vmatpush.bf16.msra.mxu0 %v376
    %491 = vmatmul.bf16.gmra.mxu0 %v68
    %v492 = vpop.f32.mrf.mxu0
    %v493 = vadd.f32 %v480, %v492
    %v494 = vpop.f32.mrf.mxu0
    %495 = vdwg.mxu0
    %496 = vmatpush.bf16.msra.mxu0 %v391
    %497 = vmatpush.bf16.msra.mxu0 %v390
    %498 = vmatpush.bf16.msra.mxu0 %v389
    %499 = vmatpush.bf16.msra.mxu0 %v388
    %500 = vmatpush.bf16.msra.mxu0 %v387
    %501 = vmatpush.bf16.msra.mxu0 %v386
    %502 = vmatpush.bf16.msra.mxu0 %v385
    %503 = vmatpush.bf16.msra.mxu0 %v384
    %504 = vmatmul.bf16.gmra.mxu0 %v69
    %v505 = vpop.f32.mrf.mxu0
    %v506 = vadd.f32 %v493, %v505
    %v507 = vpop.f32.mrf.mxu0
    %508 = vdwg.mxu0
    %509 = vmatpush.bf16.msra.mxu0 %v399
    %510 = vmatpush.bf16.msra.mxu0 %v398
    %511 = vmatpush.bf16.msra.mxu0 %v397
    %512 = vmatpush.bf16.msra.mxu0 %v396
    %513 = vmatpush.bf16.msra.mxu0 %v395
    %514 = vmatpush.bf16.msra.mxu0 %v394
    %515 = vmatpush.bf16.msra.mxu0 %v393
    %516 = vmatpush.bf16.msra.mxu0 %v392
    %517 = vmatmul.bf16.gmra.mxu0 %v70
    %v518 = vpop.f32.mrf.mxu0
    %v519 = vadd.f32 %v506, %v518
    %v520 = vpop.f32.mrf.mxu0
    %521 = vdwg.mxu0
    %522 = vmatpush.bf16.msra.mxu0 %v407
    %523 = vmatpush.bf16.msra.mxu0 %v406
    %524 = vmatpush.bf16.msra.mxu0 %v405
    %525 = vmatpush.bf16.msra.mxu0 %v404
    %526 = vmatpush.bf16.msra.mxu0 %v403
    %527 = vmatpush.bf16.msra.mxu0 %v402
    %528 = vmatpush.bf16.msra.mxu0 %v401
    %529 = vmatpush.bf16.msra.mxu0 %v400
    %530 = vmatmul.bf16.gmra.mxu0 %v71
    %v531 = vpop.f32.mrf.mxu0
    %v532 = vadd.f32 %v519, %v531
    %v533 = vpop.f32.mrf.mxu0
    %534 = vdwg.mxu0
    %535 = vmatpush.bf16.msra.mxu0 %v415
    %536 = vmatpush.bf16.msra.mxu0 %v414
    %537 = vmatpush.bf16.msra.mxu0 %v413
    %538 = vmatpush.bf16.msra.mxu0 %v412
    %539 = vmatpush.bf16.msra.mxu0 %v411
    %540 = vmatpush.bf16.msra.mxu0 %v410
    %541 = vmatpush.bf16.msra.mxu0 %v409
    %542 = vmatpush.bf16.msra.mxu0 %v408
    %543 = vmatmul.bf16.gmra.mxu0 %v72
    %v544 = vpop.f32.mrf.mxu0
    %v545 = vadd.f32 %v532, %v544
    %v546 = vpop.f32.mrf.mxu0
    %547 = vdwg.mxu0
    %548 = vmatpush.bf16.msra.mxu0 0
    %549 = vmatpush.bf16.msra.mxu0 0
    %550 = vmatpush.bf16.msra.mxu0 0
    %551 = vmatpush.bf16.msra.mxu0 0
    %552 = vmatpush.bf16.msra.mxu0 0
    %553 = vmatpush.bf16.msra.mxu0 0
    %554 = vmatpush.bf16.msra.mxu0 0
    %555 = vmatpush.bf16.msra.mxu0 %v416
    %556 = vmatmul.bf16.gmra.mxu0 %v468
    %v557 = vpop.f32.mrf.mxu0
    %v558 = vadd.f32 %v545, %v557
    %v559 = vpop.f32.mrf.mxu0
    %560 = vdwg.mxu0
    %vm561 = vcmp.gt.f32.partialorder %v558, 608.0524
    %v562 = vsel %vm561, 1, 0
    %v563 = vcvt.s32.f32 %v562
    %v564 = vpack.c.bf16 %v563, %v563
    %v565 = vld [vmem:[#allocation6] sm:$0xf]
    %v566 = vld [vmem:[#allocation6 + $0x4] sm:$0xf]
    %v567 = vld [vmem:[#allocation6 + $0x8] sm:$0xf]
    %v568 = vld [vmem:[#allocation6 + $0xc] sm:$0xf]
    %v569 = vld [vmem:[#allocation6 + $0x10] sm:$0xf]
    %v570 = vld [vmem:[#allocation6 + $0x14] sm:$0xf]
    %v571 = vld [vmem:[#allocation6 + $0x18] sm:$0xf]
    %v572 = vld [vmem:[#allocation6 + $0x1c] sm:$0xf]
    %v573 = vld [vmem:[#allocation6 + $0x20] sm:$0xf]
    %v574 = vld [vmem:[#allocation6 + $0x24] sm:$0xf]
    %v575 = vld [vmem:[#allocation6 + $0x28] sm:$0xf]
    %v576 = vld [vmem:[#allocation6 + $0x2c] sm:$0xf]
    %v577 = vld [vmem:[#allocation6 + $0x30] sm:$0xf]
    %v578 = vld [vmem:[#allocation6 + $0x34] sm:$0xf]
    %v579 = vld [vmem:[#allocation6 + $0x38] sm:$0xf]
    %v580 = vld [vmem:[#allocation6 + $0x3c] sm:$0xf]
    %v597 = vunpack.c.l.b16 %v565
    %v598 = vunpack.c.l.b16 %v566
    %v599 = vunpack.c.l.b16 %v567
    %v600 = vunpack.c.l.b16 %v568
    %v601 = vunpack.c.l.b16 %v569
    %v602 = vunpack.c.l.b16 %v570
    %v603 = vunpack.c.l.b16 %v571
    %v604 = vunpack.c.l.b16 %v572
    %v605 = vunpack.c.l.b16 %v573
    %v606 = vunpack.c.l.b16 %v574
    %v607 = vunpack.c.l.b16 %v575
    %v608 = vunpack.c.l.b16 %v576
    %v609 = vunpack.c.l.b16 %v577
    %v610 = vunpack.c.l.b16 %v578
    %v611 = vunpack.c.l.b16 %v579
    %v612 = vunpack.c.l.b16 %v580
    %v613 = vpack.c.b16 %v598, %v597
    %v614 = vpack.c.b16 %v600, %v599
    %v615 = vpack.c.b16 %v602, %v601
    %v616 = vpack.c.b16 %v604, %v603
    %v617 = vpack.c.b16 %v606, %v605
    %v618 = vpack.c.b16 %v608, %v607
    %v619 = vpack.c.b16 %v610, %v609
    %v620 = vpack.c.b16 %v612, %v611
    %629 = vmatpush.bf16.msra.mxu0 %v620
    %630 = vmatpush.bf16.msra.mxu0 %v619
    %631 = vmatpush.bf16.msra.mxu0 %v618
    %632 = vmatpush.bf16.msra.mxu0 %v617
    %633 = vmatpush.bf16.msra.mxu0 %v616
    %634 = vmatpush.bf16.msra.mxu0 %v615
    %635 = vmatpush.bf16.msra.mxu0 %v614
    %636 = vmatpush.bf16.msra.mxu0 %v613
    %637 = vmatmul.bf16.gmra.mxu0 %v564
    %v638 = vpop.f32.mrf.mxu0
    %v639 = vadd.f32 0.0, %v638
    %v640 = vpop.f32.mrf.mxu0
    %641 = vdwg.mxu0
    %vm642 = vcmp.gt.f32.partialorder %v639, 608.0524
    %v643 = vsel %vm642, 1, 0
    %v644 = vcvt.s32.f32 %v643
    %v645 = vpack.c.bf16 %v644, %v644
    %646 = vst [vmem:[%s3] sm:$0xf] %v645
    // Predicated region
    $region26: #{testnet_forward.1} parent=1 // pred_check
      _
    $region27: #{testnet_forward.1} parent=1 // pred_check_branch
      %648 = sbr.rel (0) target = $region29
    $region28: #{testnet_forward.1} parent=1 // pred_region
      _
    $region29: #{testnet_forward.1} parent=1 // pred_fallthru
      _
    // Predicated region
    $region30: #{testnet_forward.1} parent=1 // pred_check
      _
    $region31: #{testnet_forward.1} parent=1 // pred_check_branch
      %650 = sbr.rel (0) target = $region33
    $region32: #{testnet_forward.1} parent=1 // pred_region
      _
    $region33: #{testnet_forward.1} parent=1 // pred_fallthru
      _
    %651 = vsyncpa [#allocation3], 1
    %652 = vsyncpa [#allocation5], 1

</llo_original>
